<compile_context>
chip_gen: v5e
topology: v5e:2x2
jax: 0.10.0
libtpu: 0.0.40
codegen_flags: <defaults>
</compile_context>

<pallas_src>
import jax
import jax.numpy as jnp
from jax.experimental import pallas as pl
from jax.experimental.pallas import tpu as pltpu

NUM_CLASSES = 2


def _round_up(x, m):
    return ((x + m - 1) // m) * m


def _mlp_logsoftmax_kernel(x_ref, w_ref, b_ref, o_ref):
    # x_ref: (tile_m, group*F) lane-dense row slab (group rows packed per slab row)
    # w_ref: (group*F, group*C) block-diagonal "class-difference" weights
    # b_ref: (1, group*C) class-difference bias
    # o_ref: (tile_m, group*C) log-probabilities (slab layout)
    #
    # d[m, g*C + c] = z[row, 1-c] - z[row, c]   (z = x @ W.T + b of the original module)
    # log_softmax(z)[row, c] = -softplus(d)     (exact for 2 classes)
    d = jnp.dot(x_ref[...], w_ref[...], preferred_element_type=jnp.float32) + b_ref[...]
    m = jnp.maximum(d, 0.0)
    softplus_d = m + jnp.log(jnp.exp(d - m) + jnp.exp(-m))  # stable softplus(d)
    o_ref[...] = (-softplus_d).astype(o_ref.dtype)


def mlp_forward(x, weight, bias, *, tile_n=4096):
    """x: [N, F] float32; weight: [C, F] (PyTorch nn.Linear layout); bias: [C].

    Returns log_softmax(x @ weight.T + bias, axis=1) with shape [N, C], C == 2.
    """
    n, f = x.shape
    c = weight.shape[0]
    assert c == NUM_CLASSES == 2, "kernel specialised to the module's num_classes=2"

    # Pack `group` consecutive rows into one 128-wide lane slab (free reshape)
    # whenever the feature width divides 128; otherwise fall back to group=1.
    group = 128 // f if (f <= 128 and 128 % f == 0) else 1

    # Row tile must be a multiple of 8*group so the slab block is (8k, lanes)-aligned.
    row_align = 8 * group
    tile_rows = _round_up(min(tile_n, _round_up(max(n, 1), row_align)), row_align)
    n_pad = _round_up(n, tile_rows)

    x32 = x.astype(jnp.float32)
    if n_pad != n:
        x32 = jnp.pad(x32, ((0, n_pad - n), (0, 0)))
    m_pad = n_pad // group
    tile_m = tile_rows // group
    x_slab = x32.reshape(m_pad, group * f)  # free row-major view, lane-dense

    # Class-difference weights: column c gets (W[1-c] - W[c]); block-diagonal over groups.
    wd = (weight[::-1, :] - weight).T.astype(jnp.float32)        # (F, 2)
    bd = (bias[::-1] - bias).astype(jnp.float32)                 # (2,)
    w_diff = jnp.kron(jnp.eye(group, dtype=jnp.float32), wd)     # (group*F, group*2)
    b_diff = jnp.tile(bd, group).reshape(1, group * c)           # (1, group*2)

    grid = (m_pad // tile_m,)
    out_slab = pl.pallas_call(
        _mlp_logsoftmax_kernel,
        out_shape=jax.ShapeDtypeStruct((m_pad, group * c), jnp.float32),
        grid_spec=pltpu.PrefetchScalarGridSpec(
            num_scalar_prefetch=0,
            grid=grid,
            in_specs=[
                # x slab streams over rows; lane dim is 128-wide (or full F).
                pl.BlockSpec((tile_m, group * f), lambda i: (i, 0)),
                # Tiny weight / bias: constant block index -> stays resident in VMEM.
                pl.BlockSpec((group * f, group * c), lambda i: (0, 0)),
                pl.BlockSpec((1, group * c), lambda i: (0, 0)),
            ],
            out_specs=pl.BlockSpec((tile_m, group * c), lambda i: (i, 0)),
        ),
        compiler_params=pltpu.CompilerParams(
            # Independent row tiles: shard across TensorCores (v7x megacore).
            dimension_semantics=("parallel",),
        ),
    )(x_slab, w_diff, b_diff)

    # Free view back to [N_pad, C], then drop padded rows.
    return out_slab.reshape(n_pad, c)[:n]


if __name__ == "__main__":
    # Small shapes consistent with the module: num_features = args.p -> pick 32.
    num_features = 32
    n_nodes = 16  # number of graph nodes (not a tile multiple -> exercises padding)

    key = jax.random.PRNGKey(0)
    kx, kw, kb = jax.random.split(key, 3)

    x = jax.random.normal(kx, (n_nodes, num_features), dtype=jnp.float32)
    # Deterministic parameter init (synthetic; mimics torch.nn.Linear shapes).
    bound = 1.0 / (num_features ** 0.5)
    weight = jax.random.uniform(
        kw, (NUM_CLASSES, num_features), dtype=jnp.float32,
        minval=-bound, maxval=bound)
    bias = jax.random.uniform(
        kb, (NUM_CLASSES,), dtype=jnp.float32, minval=-bound, maxval=bound)

    # edge_index / edge_attr are unused by MLP.forward; omitted.
    out = mlp_forward(x, weight, bias)
    jax.block_until_ready(out)

    # Sanity check against pure-JAX reference.
    ref = jax.nn.log_softmax(x @ weight.T + bias, axis=1)
    assert out.shape == (n_nodes, NUM_CLASSES)
    assert jnp.allclose(out, ref, atol=1e-5, rtol=1e-5)

    print("KERNEL_OK")
</pallas_src>

<mosaic_0001>
module attributes {stable_mosaic.version = 11 : i64} {
  func.func @_mlp_logsoftmax_kernel(%arg0: i32, %arg1: memref<8x128xf32, #tpu.memory_space<vmem>>, %arg2: memref<128x8xf32, #tpu.memory_space<vmem>>, %arg3: memref<1x8xf32, #tpu.memory_space<vmem>>, %arg4: memref<8x8xf32, #tpu.memory_space<vmem>>) attributes {dimension_semantics = [#tpu.dimension_semantics<parallel>], iteration_bounds = array<i64: 1>, scalar_prefetch = 0 : i64, scratch_operands = 0 : i64, tpu.core_type = #tpu.core_type<tc>, window_params = [{transform_indices = @transform_0, window_bounds = array<i64: 8, 128>}, {pipeline_mode = #tpu.pipeline_mode<synchronous>, transform_indices = @transform_1, window_bounds = array<i64: 128, 8>}, {pipeline_mode = #tpu.pipeline_mode<synchronous>, transform_indices = @transform_2, window_bounds = array<i64: 1, 8>}, {transform_indices = @transform_3, window_bounds = array<i64: 8, 8>}]} {
    %c0 = arith.constant 0 : index
    %c0_0 = arith.constant 0 : index
    %0 = vector.load %arg1[%c0, %c0_0] : memref<8x128xf32, #tpu.memory_space<vmem>>, vector<8x128xf32>
    %c0_1 = arith.constant 0 : index
    %c0_2 = arith.constant 0 : index
    %1 = vector.load %arg2[%c0_1, %c0_2] : memref<128x8xf32, #tpu.memory_space<vmem>>, vector<128x8xf32>
    %cst = arith.constant dense<0.000000e+00> : vector<8x8xf32>
    %2 = tpu.matmul %0, %1, %cst {dimension_numbers = #tpu.dot_dimension_numbers<[1], [0], [0], [1], [0, 0, 1, 1], [], []>} : vector<8x128xf32>, vector<128x8xf32>, vector<8x8xf32> -> vector<8x8xf32>
    %c0_3 = arith.constant 0 : index
    %c0_4 = arith.constant 0 : index
    %3 = vector.load %arg3[%c0_3, %c0_4] : memref<1x8xf32, #tpu.memory_space<vmem>>, vector<1x8xf32>
    %4 = vector.broadcast %3 : vector<1x8xf32> to vector<8x8xf32>
    %5 = arith.addf %2, %4 : vector<8x8xf32>
    %cst_5 = arith.constant 0.000000e+00 : f32
    %6 = vector.broadcast %cst_5 : f32 to vector<8x8xf32>
    %7 = arith.maximumf %5, %6 : vector<8x8xf32>
    %8 = arith.subf %5, %7 : vector<8x8xf32>
    %9 = math.exp %8 : vector<8x8xf32>
    %cst_6 = arith.constant 0.000000e+00 : f32
    %10 = vector.broadcast %cst_6 : f32 to vector<8x8xf32>
    %11 = arith.subf %10, %7 : vector<8x8xf32>
    %12 = math.exp %11 : vector<8x8xf32>
    %13 = arith.addf %9, %12 : vector<8x8xf32>
    %14 = math.log %13 : vector<8x8xf32>
    %15 = arith.addf %7, %14 : vector<8x8xf32>
    %cst_7 = arith.constant 0.000000e+00 : f32
    %16 = vector.broadcast %cst_7 : f32 to vector<8x8xf32>
    %17 = arith.subf %16, %15 : vector<8x8xf32>
    %c0_8 = arith.constant 0 : index
    %c0_9 = arith.constant 0 : index
    %18 = vector.load %arg4[%c0_8, %c0_9] : memref<8x8xf32, #tpu.memory_space<vmem>>, vector<8x8xf32>
    tpu.vector_store %arg4[%c0_8, %c0_9], %17 {strides = array<i32>} : memref<8x8xf32, #tpu.memory_space<vmem>>, vector<8x8xf32>,
    return
  }
  func.func @transform_0(%arg0: i32) -> (i32, i32) {
    %c0_i32 = arith.constant 0 : i32
    %c0_i32_0 = arith.constant 0 : i32
    return %arg0, %c0_i32 : i32, i32
  }
  func.func @transform_1(%arg0: i32) -> (i32, i32) {
    %c0_i32 = arith.constant 0 : i32
    %c0_i32_0 = arith.constant 0 : i32
    %c0_i32_1 = arith.constant 0 : i32
    return %c0_i32, %c0_i32_0 : i32, i32
  }
  func.func @transform_2(%arg0: i32) -> (i32, i32) {
    %c0_i32 = arith.constant 0 : i32
    %c0_i32_0 = arith.constant 0 : i32
    %c0_i32_1 = arith.constant 0 : i32
    return %c0_i32, %c0_i32_0 : i32, i32
  }
  func.func @transform_3(%arg0: i32) -> (i32, i32) {
    %c0_i32 = arith.constant 0 : i32
    %c0_i32_0 = arith.constant 0 : i32
    return %arg0, %c0_i32 : i32, i32
  }
}

</mosaic_0001>

<llo_original>
// kernel: tpu_custom_call.1
$region0: #{tpu_custom_call.1}
  #allocation0 [shape = 'u32[]', space=smem, size = 0x4, offset = 0x4, fixed_abs, tag = 'smem constant byte address 0x4 - core index']
  #allocation1 [shape = 'u32[72,128]{1,0:T(1,128)}', space=vmem, size = 0x9000, scoped, tag = 'internal scratch']
  %s0 = inlined_call_operand.vmem [shape: f32[8,128], index: 0, kind: input, shape index: {}]
  %s1 = inlined_call_operand.vmem [shape: f32[128,8], index: 1, kind: input, shape index: {}]
  %s2 = inlined_call_operand.vmem [shape: f32[1,8], index: 2, kind: input, shape index: {}]
  %s3 = inlined_call_operand.hbm [shape: f32[8,8], index: 3, kind: output, shape index: {}]
  %s4 = sld [smem:[#allocation0]]
  $region22: #{tpu_custom_call.1} parent=0
    _
  %s6 = ssub.s32 1, %s4
  %s7 = scalar_select 0, %s6, %s4
  $region1: #{tpu_custom_call.1} parent=0
    #allocation2 [shape = 'u8[4096]{0}', space=vmem, size = 0x1000, scoped, tag = 'output window, operand 0, single buffered']
    #allocation3 [shape = 's32[1]{0}', space=sflag, size = 0x4, scoped, tag = 'scoped memory for tpu_custom_call.1']
    %8 = vsyncpa [#allocation3], 0
    // Predicated region
    $region2: #{tpu_custom_call.1} parent=1 // pred_check
      _
    $region3: #{tpu_custom_call.1} parent=1 // pred_check_branch
      %10 = sbr.rel (0) target = $region5
    $region4: #{tpu_custom_call.1} parent=1 // pred_region
      _
    $region5: #{tpu_custom_call.1} parent=1 // pred_fallthru
      _
    // Predicated region
    $region6: #{tpu_custom_call.1} parent=1 // pred_check
      _
    $region7: #{tpu_custom_call.1} parent=1 // pred_check_branch
      %12 = sbr.rel (0) target = $region9
    $region8: #{tpu_custom_call.1} parent=1 // pred_region
      _
    $region9: #{tpu_custom_call.1} parent=1 // pred_fallthru
      _
    // Predicated region
    $region10: #{tpu_custom_call.1} parent=1 // pred_check
      _
    $region11: #{tpu_custom_call.1} parent=1 // pred_check_branch
      %14 = sbr.rel (0) target = $region13
    $region12: #{tpu_custom_call.1} parent=1 // pred_region
      _
    $region13: #{tpu_custom_call.1} parent=1 // pred_fallthru
      _
    %v15 = vld [vmem:[%s0] sm:$0xff]
    %v16 = vld [vmem:[%s1] sm:$0xff]
    %v17 = vld [vmem:[%s1 + $0x8] sm:$0xff]
    %v18 = vld [vmem:[%s1 + $0x10] sm:$0xff]
    %v19 = vld [vmem:[%s1 + $0x18] sm:$0xff]
    %v20 = vld [vmem:[%s1 + $0x20] sm:$0xff]
    %v21 = vld [vmem:[%s1 + $0x28] sm:$0xff]
    %v22 = vld [vmem:[%s1 + $0x30] sm:$0xff]
    %v23 = vld [vmem:[%s1 + $0x38] sm:$0xff]
    %v24 = vld [vmem:[%s1 + $0x40] sm:$0xff]
    %v25 = vld [vmem:[%s1 + $0x48] sm:$0xff]
    %v26 = vld [vmem:[%s1 + $0x50] sm:$0xff]
    %v27 = vld [vmem:[%s1 + $0x58] sm:$0xff]
    %v28 = vld [vmem:[%s1 + $0x60] sm:$0xff]
    %v29 = vld [vmem:[%s1 + $0x68] sm:$0xff]
    %v30 = vld [vmem:[%s1 + $0x70] sm:$0xff]
    %v31 = vld [vmem:[%s1 + $0x78] sm:$0xff]
    %v32 = vld [vmem:[%s2] sm:$0x1]
    %v34 = vperm.slane %v32, 0
    %36 = vmatpush.msra.mxu0 %v31
    %37 = vmatpush.msra.mxu0 %v30
    %38 = vmatpush.msra.mxu0 %v29
    %39 = vmatpush.msra.mxu0 %v28
    %40 = vmatpush.msra.mxu0 %v27
    %41 = vmatpush.msra.mxu0 %v26
    %42 = vmatpush.msra.mxu0 %v25
    %43 = vmatpush.msra.mxu0 %v24
    %44 = vmatpush.msra.mxu0 %v23
    %45 = vmatpush.msra.mxu0 %v22
    %46 = vmatpush.msra.mxu0 %v21
    %47 = vmatpush.msra.mxu0 %v20
    %48 = vmatpush.msra.mxu0 %v19
    %49 = vmatpush.msra.mxu0 %v18
    %50 = vmatpush.msra.mxu0 %v17
    %51 = vmatpush.msra.mxu0 %v16
    %52 = vmatmul.f32.gmra.mxu0 %v15
    %v53 = vpop.f32.mrf.mxu0
    %v54 = vadd.f32 %v34, %v53
    %55 = vdwg.mxu0
    %v56 = vmax.f32 %v54, 0.0
    %v57 = vsub.f32 %v54, %v56
    %v58 = vmul.f32 %v57, 1.442695
    %v59 = vpow.pop %v58
    %v60 = vsub.f32 0.0, %v56
    %v61 = vmul.f32 %v60, 1.442695
    %v62 = vpow.pop %v61
    %v63 = vadd.f32 %v59, %v62
    %v64 = vlog2.pop %v63
    %v65 = vmul.f32 %v64, 0.6931472
    %v66 = vadd.f32 %v56, %v65
    %v67 = vsub.f32 0.0, %v66
    %vm68 = vcmask 64512
    %69 = vst.msk [vmem:[#allocation2] sm:$0xff] %vm68, %v67
    // Predicated region
    $region14: #{tpu_custom_call.1} parent=1 // pred_check
      _
    $region15: #{tpu_custom_call.1} parent=1 // pred_check_branch
      %71 = sbr.rel (0) target = $region17
    $region16: #{tpu_custom_call.1} parent=1 // pred_region
      %73 = vsyncadd [#allocation3], 0
      %s75 = sshll.u32 [#allocation2], 4
      %s76 = int_to_ptr.vmem [resolvable:$true] %s75
      %s77 = sshll.u32 %s3, 4
      %s78 = int_to_ptr.hbm [resolvable:$true] %s77
      %80 = dma.vmem_to_hbm [thread:$0]  %s76, 128, %s78, [#allocation3]
    $region17: #{tpu_custom_call.1} parent=1 // pred_fallthru
      _
    // Predicated region
    $region18: #{tpu_custom_call.1} parent=1 // pred_check
      _
    $region19: #{tpu_custom_call.1} parent=1 // pred_check_branch
      %82 = sbr.rel (0) target = $region21
    $region20: #{tpu_custom_call.1} parent=1 // pred_region
      %84 = dma.done [#allocation3], 128
    $region21: #{tpu_custom_call.1} parent=1 // pred_fallthru
      _
    %85 = vsyncpa [#allocation3], 1

</llo_original>
